<compile_context>
chip_gen: v7x
topology: tpu7x:2x2x1
jax: 0.10.0
libtpu: 0.0.40
codegen_flags: <defaults>
</compile_context>

<pallas_src>
import jax
import jax.numpy as jnp
from jax import lax
from jax.experimental import pallas as pl
from jax.experimental.pallas import tpu as pltpu

# ---------------- synthetic "args" configuration ----------------
EXTRACT_FEAT_DIM = 8                       # args.extract_feat_dim
RL_HIDDEN        = 32                      # args.rl_hidden
ACTION_DIM       = 3                       # args.action_dim
INITIAL_OBJ_NUM  = 4                       # args.initial_obj_num
HEAD_SIZES       = (3, 4, 2)               # len(action_values[i+1]) for i=0..ACTION_DIM-1
A_MAX            = max(HEAD_SIZES)         # heads padded to A_MAX (masked via bias)
NUM_DATA         = 2                       # batch of (state, action) pairs to evaluate

F5      = 5 * EXTRACT_FEAT_DIM                                           # action_feature input
D_STATE = 3 * EXTRACT_FEAT_DIM * INITIAL_OBJ_NUM + 2 * EXTRACT_FEAT_DIM  # value_player input
D_IN    = F5 + D_STATE                                                   # fused kernel input
H2      = 2 * RL_HIDDEN                                                  # fused hidden width
HEADS_W = ACTION_DIM * A_MAX                                             # packed head logits
OUT_W   = 8                                                              # output slab width
NEG_BIG = -1e30                                                          # padded-lane logit


# ---------------- Pallas kernel (one batch tile per grid step) ----------------
def ac_eval_kernel(actions_ref,            # (TB, 1+ACTION_DIM) int32
                   x_ref,                  # (TB, D_IN) bf16  = [selected_state | state]
                   w1_ref, b1_ref,         # (D_IN, H2) bf16, (1, H2) f32   block-diag
                   w2_ref, b2_ref,         # (H2, H2)  bf16, (1, H2) f32    block-diag
                   w3_ref, b3_ref,         # (H2, HEADS_W+1) bf16, (1, HEADS_W+1) f32
                   out_ref):               # (TB, OUT_W) f32
    f32 = jnp.float32
    bf16 = jnp.bfloat16
    TB = out_ref.shape[0]

    acts = actions_ref[...]                                              # (TB, 1+AD) int32

    # ---- fused block-diagonal MLP: action_feature path || value_player path
    x = x_ref[...]
    h = jnp.tanh(jnp.dot(x, w1_ref[...], preferred_element_type=f32) + b1_ref[...])
    h = jnp.tanh(jnp.dot(h.astype(bf16), w2_ref[...],
                         preferred_element_type=f32) + b2_ref[...])
    y = jnp.dot(h.astype(bf16), w3_ref[...],
                preferred_element_type=f32) + b3_ref[...]                # (TB, HEADS_W+1)
    # lanes [0, HEADS_W): per-head logits (padded lanes biased to -1e30)
    # lane  HEADS_W     : state value

    total_logp = jnp.zeros((TB, 1), f32)
    total_ent = jnp.zeros((TB, 1), f32)
    for k in range(ACTION_DIM):                                          # static, small
        logits = y[:, k * A_MAX:(k + 1) * A_MAX]                         # (TB, A_MAX)
        m = jnp.max(logits, axis=-1, keepdims=True)                      # (TB, 1) finite
        e = jnp.exp(logits - m)                                          # padded lanes -> 0
        z = jnp.sum(e, axis=-1, keepdims=True)                           # (TB, 1)
        inv_z = 1.0 / z                                                  # exact (unbiased entropy)
        logz = jnp.log(z) + m
        logp = logits - logz                                             # log-softmax (valid lanes)
        p = e * inv_z
        ent_k = -jnp.sum(p * logp, axis=-1, keepdims=True)               # p=0 on padded lanes
        a_k = acts[:, 1 + k:2 + k]                                       # (TB, 1), always valid lane
        a_oh = lax.broadcasted_iota(jnp.int32, logits.shape, 1) == a_k
        logp_k = jnp.sum(jnp.where(a_oh, logp, 0.0), axis=-1, keepdims=True)
        total_logp = total_logp + logp_k
        total_ent = total_ent + ent_k

    v = y[:, HEADS_W:HEADS_W + 1]                                        # (TB, 1)

    # ---- pack the three scalars per sample into a narrow 8-lane slab
    oc = lax.broadcasted_iota(jnp.int32, (TB, OUT_W), 1)
    out_ref[...] = (jnp.where(oc == 0, total_logp, 0.0)
                    + jnp.where(oc == 1, v, 0.0)
                    + jnp.where(oc == 2, total_ent, 0.0))


# ---------------- parameter init (deterministic, PyTorch-like uniform) ----------------
def _linear(key, fan_in, fan_out):
    k1, k2 = jax.random.split(key)
    bound = 1.0 / jnp.sqrt(jnp.float32(fan_in))
    w = jax.random.uniform(k1, (fan_out, fan_in), jnp.float32, -bound, bound)
    b = jax.random.uniform(k2, (fan_out,), jnp.float32, -bound, bound)
    return w, b


def init_params(key):
    keys = jax.random.split(key, 8 + ACTION_DIM)
    p = {}
    p["w1"], p["b1"] = _linear(keys[0], F5, RL_HIDDEN)
    p["w2"], p["b2"] = _linear(keys[1], RL_HIDDEN, RL_HIDDEN)
    # action_player[0] = Linear(H, 1): created for parity but unused by evaluate()
    p["head0"] = _linear(keys[2], RL_HIDDEN, 1)
    p["heads"] = [_linear(keys[3 + k], RL_HIDDEN, HEAD_SIZES[k]) for k in range(ACTION_DIM)]
    p["wv1"], p["bv1"] = _linear(keys[3 + ACTION_DIM], D_STATE, RL_HIDDEN)
    p["wv2"], p["bv2"] = _linear(keys[4 + ACTION_DIM], RL_HIDDEN, RL_HIDDEN)
    p["wv3"], p["bv3"] = _linear(keys[5 + ACTION_DIM], RL_HIDDEN, 1)
    return p


# ---------------- weight packing: block-diagonal fusion of the two MLPs ----------------
def pack_weights(params):
    H = RL_HIDDEN
    bf16 = jnp.bfloat16

    w1 = jnp.zeros((D_IN, H2), jnp.float32)
    w1 = w1.at[:F5, :H].set(params["w1"].T)
    w1 = w1.at[F5:, H:].set(params["wv1"].T)
    b1 = jnp.concatenate([params["b1"], params["bv1"]]).reshape(1, H2)

    w2 = jnp.zeros((H2, H2), jnp.float32)
    w2 = w2.at[:H, :H].set(params["w2"].T)
    w2 = w2.at[H:, H:].set(params["wv2"].T)
    b2 = jnp.concatenate([params["b2"], params["bv2"]]).reshape(1, H2)

    w3 = jnp.zeros((H2, HEADS_W + 1), jnp.float32)
    b3 = jnp.full((1, HEADS_W + 1), NEG_BIG, jnp.float32)   # padded head lanes masked via bias
    for k in range(ACTION_DIM):
        wk, bk = params["heads"][k]
        w3 = w3.at[:H, k * A_MAX:k * A_MAX + HEAD_SIZES[k]].set(wk.T)
        b3 = b3.at[0, k * A_MAX:k * A_MAX + HEAD_SIZES[k]].set(bk)
    w3 = w3.at[H:, HEADS_W:].set(params["wv3"].T)
    b3 = b3.at[0, HEADS_W].set(params["bv3"][0])

    return [w1.astype(bf16), b1, w2.astype(bf16), b2, w3.astype(bf16), b3]


# ---------------- wrapper: layout glue + pallas_call ----------------
def pallas_evaluate(params, states, actions, *, tile_b=None):
    efd = EXTRACT_FEAT_DIM
    nobj = INITIAL_OBJ_NUM
    n = states.shape[0]
    bf16 = jnp.bfloat16

    # Batch tile: target >=2 grid steps so "parallel" can shard across both v7x
    # TensorCores; cap at 1024 rows (per-tile VMEM ~1 MiB, fine on all chips).
    if tile_b is None:
        tile_b = max(8, min(1024, 8 * pl.cdiv(pl.cdiv(n, 2), 8)))
    n_pad = tile_b * pl.cdiv(n, tile_b)
    pad = n_pad - n

    states_p = jnp.pad(states, ((0, pad), (0, 0)))
    actions_p = jnp.pad(actions.astype(jnp.int32), ((0, pad), (0, 0)))

    # layout glue (gather / reshape / concat) stays in plain JAX:
    set_feat = states_p[:, :2 * efd]                                     # (n_pad, 2*efd)
    obj_feat = states_p[:, 2 * efd:].reshape(n_pad, nobj, 3 * efd)
    obj_idx = actions_p[:, 0]                                            # (n_pad,)
    sel_obj = jnp.take_along_axis(obj_feat, obj_idx[:, None, None], axis=1)[:, 0, :]
    selected_state = jnp.concatenate([set_feat, sel_obj], axis=-1)       # (n_pad, F5)
    fused_in = jnp.concatenate([selected_state, states_p], axis=-1).astype(bf16)  # (n_pad, D_IN)

    weights = pack_weights(params)                                       # [w1,b1,w2,b2,w3,b3]

    in_specs = [
        pl.BlockSpec((tile_b, 1 + ACTION_DIM), lambda i: (i, 0)),
        pl.BlockSpec((tile_b, D_IN), lambda i: (i, 0)),
    ] + [
        pl.BlockSpec(w.shape, lambda i: (0, 0)) for w in weights
    ]
    out_specs = pl.BlockSpec((tile_b, OUT_W), lambda i: (i, 0))
    out_shape = jax.ShapeDtypeStruct((n_pad, OUT_W), jnp.float32)

    grid_spec = pltpu.PrefetchScalarGridSpec(
        num_scalar_prefetch=0,
        grid=(n_pad // tile_b,),
        in_specs=in_specs,
        out_specs=out_specs,
    )

    fn = pl.pallas_call(
        ac_eval_kernel,
        grid_spec=grid_spec,
        out_shape=out_shape,
        compiler_params=pltpu.CompilerParams(dimension_semantics=("parallel",)),
    )
    out = fn(actions_p, fused_in, *weights)
    return out[:n, 0], out[:n, 1], out[:n, 2]


# ---------------- pure-JAX reference (matches PyTorch semantics) ----------------
def reference_evaluate(params, states, actions):
    efd = EXTRACT_FEAT_DIM
    logps, vals, ents = [], [], []
    for i in range(states.shape[0]):
        st = states[i]
        setf = st[:2 * efd]
        objf = st[2 * efd:].reshape(-1, 3 * efd)
        allst = jnp.concatenate(
            [jnp.broadcast_to(setf[None, :], (objf.shape[0], 2 * efd)), objf], axis=-1)
        h = jnp.tanh(allst @ params["w1"].T + params["b1"])
        h = jnp.tanh(h @ params["w2"].T + params["b2"])
        f = h[int(actions[i, 0])]
        lp, en = jnp.float32(0.0), jnp.float32(0.0)
        for k in range(ACTION_DIM):
            wk, bk = params["heads"][k]
            logits = f @ wk.T + bk
            logprobs = jax.nn.log_softmax(logits)
            probs = jnp.exp(logprobs)
            lp = lp + logprobs[int(actions[i, 1 + k])]
            en = en - jnp.sum(probs * logprobs)
        v = jnp.tanh(st @ params["wv1"].T + params["bv1"])
        v = jnp.tanh(v @ params["wv2"].T + params["bv2"])
        v = (v @ params["wv3"].T + params["bv3"])[0]
        logps.append(lp); vals.append(v); ents.append(en)
    return jnp.stack(logps), jnp.stack(vals), jnp.stack(ents)


# TODO(synk): act()/act_debug() require Categorical sampling + Python-side memory
# mutation; only the deterministic evaluate() forward pass is implemented here.

if __name__ == "__main__":
    key = jax.random.PRNGKey(0)
    kp, ks, ka = jax.random.split(key, 3)

    params = init_params(kp)
    states = jax.random.normal(ks, (NUM_DATA, D_STATE), jnp.float32)

    # actions[:, 0] = selected object index, actions[:, 1+k] = chosen value for head k
    a_keys = jax.random.split(ka, 1 + ACTION_DIM)
    cols = [jax.random.randint(a_keys[0], (NUM_DATA, 1), 0, INITIAL_OBJ_NUM)]
    for k in range(ACTION_DIM):
        cols.append(jax.random.randint(a_keys[1 + k], (NUM_DATA, 1), 0, HEAD_SIZES[k]))
    actions = jnp.concatenate(cols, axis=-1)

    logp, val, ent = pallas_evaluate(params, states, actions)
    jax.block_until_ready((logp, val, ent))

    r_logp, r_val, r_ent = reference_evaluate(params, states, actions)
    # bf16 inputs/weights on the MXU (f32 accumulation) -> looser tolerance than pure f32.
    assert jnp.allclose(logp, r_logp, atol=2e-2, rtol=2e-2)
    assert jnp.allclose(val, r_val, atol=2e-2, rtol=2e-2)
    assert jnp.allclose(ent, r_ent, atol=2e-2, rtol=2e-2)

    print("KERNEL_OK")
</pallas_src>

<mosaic_0001>
module attributes {stable_mosaic.version = 11 : i64} {
  func.func @ac_eval_kernel(%arg0: i32, %arg1: memref<8x4xi32, #tpu.memory_space<vmem>>, %arg2: memref<8x152xbf16, #tpu.memory_space<vmem>>, %arg3: memref<152x64xbf16, #tpu.memory_space<vmem>>, %arg4: memref<1x64xf32, #tpu.memory_space<vmem>>, %arg5: memref<64x64xbf16, #tpu.memory_space<vmem>>, %arg6: memref<1x64xf32, #tpu.memory_space<vmem>>, %arg7: memref<64x13xbf16, #tpu.memory_space<vmem>>, %arg8: memref<1x13xf32, #tpu.memory_space<vmem>>, %arg9: memref<8x8xf32, #tpu.memory_space<vmem>>) attributes {dimension_semantics = [#tpu.dimension_semantics<parallel>], iteration_bounds = array<i64: 1>, scalar_prefetch = 0 : i64, scratch_operands = 0 : i64, tpu.core_type = #tpu.core_type<tc>, window_params = [{transform_indices = @transform_0, window_bounds = array<i64: 8, 4>}, {transform_indices = @transform_1, window_bounds = array<i64: 8, 152>}, {pipeline_mode = #tpu.pipeline_mode<synchronous>, transform_indices = @transform_2, window_bounds = array<i64: 152, 64>}, {pipeline_mode = #tpu.pipeline_mode<synchronous>, transform_indices = @transform_3, window_bounds = array<i64: 1, 64>}, {pipeline_mode = #tpu.pipeline_mode<synchronous>, transform_indices = @transform_4, window_bounds = array<i64: 64, 64>}, {pipeline_mode = #tpu.pipeline_mode<synchronous>, transform_indices = @transform_5, window_bounds = array<i64: 1, 64>}, {pipeline_mode = #tpu.pipeline_mode<synchronous>, transform_indices = @transform_6, window_bounds = array<i64: 64, 13>}, {pipeline_mode = #tpu.pipeline_mode<synchronous>, transform_indices = @transform_7, window_bounds = array<i64: 1, 13>}, {transform_indices = @transform_8, window_bounds = array<i64: 8, 8>}]} {
    %c0 = arith.constant 0 : index
    %c0_0 = arith.constant 0 : index
    %0 = vector.load %arg1[%c0, %c0_0] : memref<8x4xi32, #tpu.memory_space<vmem>>, vector<8x4xi32>
    %c0_1 = arith.constant 0 : index
    %c0_2 = arith.constant 0 : index
    %1 = vector.load %arg2[%c0_1, %c0_2] : memref<8x152xbf16, #tpu.memory_space<vmem>>, vector<8x152xbf16>
    %c0_3 = arith.constant 0 : index
    %c0_4 = arith.constant 0 : index
    %2 = vector.load %arg3[%c0_3, %c0_4] : memref<152x64xbf16, #tpu.memory_space<vmem>>, vector<152x64xbf16>
    %cst = arith.constant dense<0.000000e+00> : vector<8x64xf32>
    %3 = tpu.matmul %1, %2, %cst {dimension_numbers = #tpu.dot_dimension_numbers<[1], [0], [0], [1], [0, 0, 1, 1], [], []>} : vector<8x152xbf16>, vector<152x64xbf16>, vector<8x64xf32> -> vector<8x64xf32>
    %c0_5 = arith.constant 0 : index
    %c0_6 = arith.constant 0 : index
    %4 = vector.load %arg4[%c0_5, %c0_6] : memref<1x64xf32, #tpu.memory_space<vmem>>, vector<1x64xf32>
    %5 = vector.broadcast %4 : vector<1x64xf32> to vector<8x64xf32>
    %6 = arith.addf %3, %5 : vector<8x64xf32>
    %7 = math.tanh %6 : vector<8x64xf32>
    %8 = arith.truncf %7 : vector<8x64xf32> to vector<8x64xbf16>
    %c0_7 = arith.constant 0 : index
    %c0_8 = arith.constant 0 : index
    %9 = vector.load %arg5[%c0_7, %c0_8] : memref<64x64xbf16, #tpu.memory_space<vmem>>, vector<64x64xbf16>
    %cst_9 = arith.constant dense<0.000000e+00> : vector<8x64xf32>
    %10 = tpu.matmul %8, %9, %cst_9 {dimension_numbers = #tpu.dot_dimension_numbers<[1], [0], [0], [1], [0, 0, 1, 1], [], []>} : vector<8x64xbf16>, vector<64x64xbf16>, vector<8x64xf32> -> vector<8x64xf32>
    %c0_10 = arith.constant 0 : index
    %c0_11 = arith.constant 0 : index
    %11 = vector.load %arg6[%c0_10, %c0_11] : memref<1x64xf32, #tpu.memory_space<vmem>>, vector<1x64xf32>
    %12 = vector.broadcast %11 : vector<1x64xf32> to vector<8x64xf32>
    %13 = arith.addf %10, %12 : vector<8x64xf32>
    %14 = math.tanh %13 : vector<8x64xf32>
    %15 = arith.truncf %14 : vector<8x64xf32> to vector<8x64xbf16>
    %c0_12 = arith.constant 0 : index
    %c0_13 = arith.constant 0 : index
    %16 = vector.load %arg7[%c0_12, %c0_13] : memref<64x13xbf16, #tpu.memory_space<vmem>>, vector<64x13xbf16>
    %cst_14 = arith.constant dense<0.000000e+00> : vector<8x13xf32>
    %17 = tpu.matmul %15, %16, %cst_14 {dimension_numbers = #tpu.dot_dimension_numbers<[1], [0], [0], [1], [0, 0, 1, 1], [], []>} : vector<8x64xbf16>, vector<64x13xbf16>, vector<8x13xf32> -> vector<8x13xf32>
    %c0_15 = arith.constant 0 : index
    %c0_16 = arith.constant 0 : index
    %18 = vector.load %arg8[%c0_15, %c0_16] : memref<1x13xf32, #tpu.memory_space<vmem>>, vector<1x13xf32>
    %19 = vector.broadcast %18 : vector<1x13xf32> to vector<8x13xf32>
    %20 = arith.addf %17, %19 : vector<8x13xf32>
    %cst_17 = arith.constant 0.000000e+00 : f32
    %21 = vector.broadcast %cst_17 : f32 to vector<8x1xf32>
    %cst_18 = arith.constant 0.000000e+00 : f32
    %22 = vector.broadcast %cst_18 : f32 to vector<8x1xf32>
    %23 = vector.extract_strided_slice %20 {offsets = [0, 0], sizes = [8, 4], strides = [1, 1]} : vector<8x13xf32> to vector<8x4xf32>
    %cst_19 = arith.constant dense<0xFF800000> : vector<8xf32>
    %24 = vector.multi_reduction <maximumf>, %23, %cst_19 [1] : vector<8x4xf32> to vector<8xf32>
    %25 = vector.shape_cast %24 : vector<8xf32> to vector<8x1xf32>
    %26 = vector.broadcast %25 : vector<8x1xf32> to vector<8x4xf32>
    %27 = arith.subf %23, %26 : vector<8x4xf32>
    %28 = math.exp %27 : vector<8x4xf32>
    %cst_20 = arith.constant dense<0.000000e+00> : vector<8xf32>
    %29 = vector.multi_reduction <add>, %28, %cst_20 [1] : vector<8x4xf32> to vector<8xf32>
    %30 = vector.shape_cast %29 : vector<8xf32> to vector<8x1xf32>
    %cst_21 = arith.constant 1.000000e+00 : f32
    %31 = vector.broadcast %cst_21 : f32 to vector<8x1xf32>
    %32 = arith.divf %31, %30 : vector<8x1xf32>
    %33 = math.log %30 : vector<8x1xf32>
    %34 = arith.addf %33, %25 : vector<8x1xf32>
    %35 = vector.broadcast %34 : vector<8x1xf32> to vector<8x4xf32>
    %36 = arith.subf %23, %35 : vector<8x4xf32>
    %37 = vector.broadcast %32 : vector<8x1xf32> to vector<8x4xf32>
    %38 = arith.mulf %28, %37 : vector<8x4xf32>
    %39 = arith.mulf %38, %36 : vector<8x4xf32>
    %cst_22 = arith.constant dense<0.000000e+00> : vector<8xf32>
    %40 = vector.multi_reduction <add>, %39, %cst_22 [1] : vector<8x4xf32> to vector<8xf32>
    %41 = vector.shape_cast %40 : vector<8xf32> to vector<8x1xf32>
    %cst_23 = arith.constant 0.000000e+00 : f32
    %42 = vector.broadcast %cst_23 : f32 to vector<8x1xf32>
    %43 = arith.subf %42, %41 : vector<8x1xf32>
    %44 = vector.extract_strided_slice %0 {offsets = [0, 1], sizes = [8, 1], strides = [1, 1]} : vector<8x4xi32> to vector<8x1xi32>
    %45 = tpu.iota {dimensions = array<i32: 1>} : vector<8x4xi32>
    %46 = vector.broadcast %44 : vector<8x1xi32> to vector<8x4xi32>
    %47 = arith.cmpi eq, %45, %46 : vector<8x4xi32>
    %cst_24 = arith.constant 0.000000e+00 : f32
    %48 = vector.broadcast %cst_24 : f32 to vector<8x4xf32>
    %49 = arith.select %47, %36, %48 : vector<8x4xi1>, vector<8x4xf32>
    %cst_25 = arith.constant dense<0.000000e+00> : vector<8xf32>
    %50 = vector.multi_reduction <add>, %49, %cst_25 [1] : vector<8x4xf32> to vector<8xf32>
    %51 = vector.shape_cast %50 : vector<8xf32> to vector<8x1xf32>
    %52 = arith.addf %21, %51 : vector<8x1xf32>
    %53 = arith.addf %22, %43 : vector<8x1xf32>
    %54 = vector.extract_strided_slice %20 {offsets = [0, 4], sizes = [8, 4], strides = [1, 1]} : vector<8x13xf32> to vector<8x4xf32>
    %cst_26 = arith.constant dense<0xFF800000> : vector<8xf32>
    %55 = vector.multi_reduction <maximumf>, %54, %cst_26 [1] : vector<8x4xf32> to vector<8xf32>
    %56 = vector.shape_cast %55 : vector<8xf32> to vector<8x1xf32>
    %57 = vector.broadcast %56 : vector<8x1xf32> to vector<8x4xf32>
    %58 = arith.subf %54, %57 : vector<8x4xf32>
    %59 = math.exp %58 : vector<8x4xf32>
    %cst_27 = arith.constant dense<0.000000e+00> : vector<8xf32>
    %60 = vector.multi_reduction <add>, %59, %cst_27 [1] : vector<8x4xf32> to vector<8xf32>
    %61 = vector.shape_cast %60 : vector<8xf32> to vector<8x1xf32>
    %cst_28 = arith.constant 1.000000e+00 : f32
    %62 = vector.broadcast %cst_28 : f32 to vector<8x1xf32>
    %63 = arith.divf %62, %61 : vector<8x1xf32>
    %64 = math.log %61 : vector<8x1xf32>
    %65 = arith.addf %64, %56 : vector<8x1xf32>
    %66 = vector.broadcast %65 : vector<8x1xf32> to vector<8x4xf32>
    %67 = arith.subf %54, %66 : vector<8x4xf32>
    %68 = vector.broadcast %63 : vector<8x1xf32> to vector<8x4xf32>
    %69 = arith.mulf %59, %68 : vector<8x4xf32>
    %70 = arith.mulf %69, %67 : vector<8x4xf32>
    %cst_29 = arith.constant dense<0.000000e+00> : vector<8xf32>
    %71 = vector.multi_reduction <add>, %70, %cst_29 [1] : vector<8x4xf32> to vector<8xf32>
    %72 = vector.shape_cast %71 : vector<8xf32> to vector<8x1xf32>
    %cst_30 = arith.constant 0.000000e+00 : f32
    %73 = vector.broadcast %cst_30 : f32 to vector<8x1xf32>
    %74 = arith.subf %73, %72 : vector<8x1xf32>
    %75 = vector.extract_strided_slice %0 {offsets = [0, 2], sizes = [8, 1], strides = [1, 1]} : vector<8x4xi32> to vector<8x1xi32>
    %76 = tpu.iota {dimensions = array<i32: 1>} : vector<8x4xi32>
    %77 = vector.broadcast %75 : vector<8x1xi32> to vector<8x4xi32>
    %78 = arith.cmpi eq, %76, %77 : vector<8x4xi32>
    %cst_31 = arith.constant 0.000000e+00 : f32
    %79 = vector.broadcast %cst_31 : f32 to vector<8x4xf32>
    %80 = arith.select %78, %67, %79 : vector<8x4xi1>, vector<8x4xf32>
    %cst_32 = arith.constant dense<0.000000e+00> : vector<8xf32>
    %81 = vector.multi_reduction <add>, %80, %cst_32 [1] : vector<8x4xf32> to vector<8xf32>
    %82 = vector.shape_cast %81 : vector<8xf32> to vector<8x1xf32>
    %83 = arith.addf %52, %82 : vector<8x1xf32>
    %84 = arith.addf %53, %74 : vector<8x1xf32>
    %85 = vector.extract_strided_slice %20 {offsets = [0, 8], sizes = [8, 4], strides = [1, 1]} : vector<8x13xf32> to vector<8x4xf32>
    %cst_33 = arith.constant dense<0xFF800000> : vector<8xf32>
    %86 = vector.multi_reduction <maximumf>, %85, %cst_33 [1] : vector<8x4xf32> to vector<8xf32>
    %87 = vector.shape_cast %86 : vector<8xf32> to vector<8x1xf32>
    %88 = vector.broadcast %87 : vector<8x1xf32> to vector<8x4xf32>
    %89 = arith.subf %85, %88 : vector<8x4xf32>
    %90 = math.exp %89 : vector<8x4xf32>
    %cst_34 = arith.constant dense<0.000000e+00> : vector<8xf32>
    %91 = vector.multi_reduction <add>, %90, %cst_34 [1] : vector<8x4xf32> to vector<8xf32>
    %92 = vector.shape_cast %91 : vector<8xf32> to vector<8x1xf32>
    %cst_35 = arith.constant 1.000000e+00 : f32
    %93 = vector.broadcast %cst_35 : f32 to vector<8x1xf32>
    %94 = arith.divf %93, %92 : vector<8x1xf32>
    %95 = math.log %92 : vector<8x1xf32>
    %96 = arith.addf %95, %87 : vector<8x1xf32>
    %97 = vector.broadcast %96 : vector<8x1xf32> to vector<8x4xf32>
    %98 = arith.subf %85, %97 : vector<8x4xf32>
    %99 = vector.broadcast %94 : vector<8x1xf32> to vector<8x4xf32>
    %100 = arith.mulf %90, %99 : vector<8x4xf32>
    %101 = arith.mulf %100, %98 : vector<8x4xf32>
    %cst_36 = arith.constant dense<0.000000e+00> : vector<8xf32>
    %102 = vector.multi_reduction <add>, %101, %cst_36 [1] : vector<8x4xf32> to vector<8xf32>
    %103 = vector.shape_cast %102 : vector<8xf32> to vector<8x1xf32>
    %cst_37 = arith.constant 0.000000e+00 : f32
    %104 = vector.broadcast %cst_37 : f32 to vector<8x1xf32>
    %105 = arith.subf %104, %103 : vector<8x1xf32>
    %106 = vector.extract_strided_slice %0 {offsets = [0, 3], sizes = [8, 1], strides = [1, 1]} : vector<8x4xi32> to vector<8x1xi32>
    %107 = tpu.iota {dimensions = array<i32: 1>} : vector<8x4xi32>
    %108 = vector.broadcast %106 : vector<8x1xi32> to vector<8x4xi32>
    %109 = arith.cmpi eq, %107, %108 : vector<8x4xi32>
    %cst_38 = arith.constant 0.000000e+00 : f32
    %110 = vector.broadcast %cst_38 : f32 to vector<8x4xf32>
    %111 = arith.select %109, %98, %110 : vector<8x4xi1>, vector<8x4xf32>
    %cst_39 = arith.constant dense<0.000000e+00> : vector<8xf32>
    %112 = vector.multi_reduction <add>, %111, %cst_39 [1] : vector<8x4xf32> to vector<8xf32>
    %113 = vector.shape_cast %112 : vector<8xf32> to vector<8x1xf32>
    %114 = arith.addf %83, %113 : vector<8x1xf32>
    %115 = arith.addf %84, %105 : vector<8x1xf32>
    %116 = vector.extract_strided_slice %20 {offsets = [0, 12], sizes = [8, 1], strides = [1, 1]} : vector<8x13xf32> to vector<8x1xf32>
    %117 = tpu.iota {dimensions = array<i32: 1>} : vector<8x8xi32>
    %c0_i32 = arith.constant 0 : i32
    %118 = vector.broadcast %c0_i32 : i32 to vector<8x8xi32>
    %119 = arith.cmpi eq, %117, %118 : vector<8x8xi32>
    %cst_40 = arith.constant 0.000000e+00 : f32
    %120 = vector.shape_cast %114 : vector<8x1xf32> to vector<8x1xf32>
    %121 = vector.broadcast %120 : vector<8x1xf32> to vector<8x8xf32>
    %122 = vector.broadcast %cst_40 : f32 to vector<8x8xf32>
    %123 = arith.select %119, %121, %122 : vector<8x8xi1>, vector<8x8xf32>
    %c1_i32 = arith.constant 1 : i32
    %124 = vector.broadcast %c1_i32 : i32 to vector<8x8xi32>
    %125 = arith.cmpi eq, %117, %124 : vector<8x8xi32>
    %cst_41 = arith.constant 0.000000e+00 : f32
    %126 = vector.shape_cast %116 : vector<8x1xf32> to vector<8x1xf32>
    %127 = vector.broadcast %126 : vector<8x1xf32> to vector<8x8xf32>
    %128 = vector.broadcast %cst_41 : f32 to vector<8x8xf32>
    %129 = arith.select %125, %127, %128 : vector<8x8xi1>, vector<8x8xf32>
    %130 = arith.addf %123, %129 : vector<8x8xf32>
    %c2_i32 = arith.constant 2 : i32
    %131 = vector.broadcast %c2_i32 : i32 to vector<8x8xi32>
    %132 = arith.cmpi eq, %117, %131 : vector<8x8xi32>
    %cst_42 = arith.constant 0.000000e+00 : f32
    %133 = vector.shape_cast %115 : vector<8x1xf32> to vector<8x1xf32>
    %134 = vector.broadcast %133 : vector<8x1xf32> to vector<8x8xf32>
    %135 = vector.broadcast %cst_42 : f32 to vector<8x8xf32>
    %136 = arith.select %132, %134, %135 : vector<8x8xi1>, vector<8x8xf32>
    %137 = arith.addf %130, %136 : vector<8x8xf32>
    %c0_43 = arith.constant 0 : index
    %c0_44 = arith.constant 0 : index
    %138 = vector.load %arg9[%c0_43, %c0_44] : memref<8x8xf32, #tpu.memory_space<vmem>>, vector<8x8xf32>
    tpu.vector_store %arg9[%c0_43, %c0_44], %137 {strides = array<i32>} : memref<8x8xf32, #tpu.memory_space<vmem>>, vector<8x8xf32>,
    return
  }
  func.func @transform_0(%arg0: i32) -> (i32, i32) {
    %c0_i32 = arith.constant 0 : i32
    %c0_i32_0 = arith.constant 0 : i32
    return %arg0, %c0_i32 : i32, i32
  }
  func.func @transform_1(%arg0: i32) -> (i32, i32) {
    %c0_i32 = arith.constant 0 : i32
    %c0_i32_0 = arith.constant 0 : i32
    return %arg0, %c0_i32 : i32, i32
  }
  func.func @transform_2(%arg0: i32) -> (i32, i32) {
    %c0_i32 = arith.constant 0 : i32
    %c0_i32_0 = arith.constant 0 : i32
    %c0_i32_1 = arith.constant 0 : i32
    return %c0_i32, %c0_i32_0 : i32, i32
  }
  func.func @transform_3(%arg0: i32) -> (i32, i32) {
    %c0_i32 = arith.constant 0 : i32
    %c0_i32_0 = arith.constant 0 : i32
    %c0_i32_1 = arith.constant 0 : i32
    return %c0_i32, %c0_i32_0 : i32, i32
  }
  func.func @transform_4(%arg0: i32) -> (i32, i32) {
    %c0_i32 = arith.constant 0 : i32
    %c0_i32_0 = arith.constant 0 : i32
    %c0_i32_1 = arith.constant 0 : i32
    return %c0_i32, %c0_i32_0 : i32, i32
  }
  func.func @transform_5(%arg0: i32) -> (i32, i32) {
    %c0_i32 = arith.constant 0 : i32
    %c0_i32_0 = arith.constant 0 : i32
    %c0_i32_1 = arith.constant 0 : i32
    return %c0_i32, %c0_i32_0 : i32, i32
  }
  func.func @transform_6(%arg0: i32) -> (i32, i32) {
    %c0_i32 = arith.constant 0 : i32
    %c0_i32_0 = arith.constant 0 : i32
    %c0_i32_1 = arith.constant 0 : i32
    return %c0_i32, %c0_i32_0 : i32, i32
  }
  func.func @transform_7(%arg0: i32) -> (i32, i32) {
    %c0_i32 = arith.constant 0 : i32
    %c0_i32_0 = arith.constant 0 : i32
    %c0_i32_1 = arith.constant 0 : i32
    return %c0_i32, %c0_i32_0 : i32, i32
  }
  func.func @transform_8(%arg0: i32) -> (i32, i32) {
    %c0_i32 = arith.constant 0 : i32
    %c0_i32_0 = arith.constant 0 : i32
    return %arg0, %c0_i32 : i32, i32
  }
}

</mosaic_0001>

<llo_original>
// kernel: tpu_custom_call.1
$region0: #{tpu_custom_call.1}
  #allocation0 [shape = 'u32[]', space=smem, size = 0x4, offset = 0x4, fixed_abs, tag = 'smem constant byte address 0x4 - core index']
  #allocation1 [shape = 'u32[144,128]{1,0:T(1,128)}', space=vmem, size = 0x12000, scoped, tag = 'internal scratch']
  %s0 = inlined_call_operand.vmem [shape: s32[8,4], index: 0, kind: input, shape index: {}]
  %s1 = inlined_call_operand.vmem [shape: bf16[8,152], index: 1, kind: input, shape index: {}]
  %s2 = inlined_call_operand.vmem [shape: bf16[152,64], index: 2, kind: input, shape index: {}]
  %s3 = inlined_call_operand.vmem [shape: f32[1,64], index: 3, kind: input, shape index: {}]
  %s4 = inlined_call_operand.vmem [shape: bf16[64,64], index: 4, kind: input, shape index: {}]
  %s5 = inlined_call_operand.vmem [shape: f32[1,64], index: 5, kind: input, shape index: {}]
  %s6 = inlined_call_operand.vmem [shape: bf16[64,13], index: 6, kind: input, shape index: {}]
  %s7 = inlined_call_operand.vmem [shape: f32[1,13], index: 7, kind: input, shape index: {}]
  %s8 = inlined_call_operand.hbm [shape: f32[8,8], index: 8, kind: output, shape index: {}]
  %s9 = sld [smem:[#allocation0]]
  $region42: #{tpu_custom_call.1} parent=0
    _
  %s11 = ssub.s32 1, %s9
  %s12 = scalar_select 0, %s11, %s9
  $region1: #{tpu_custom_call.1} parent=0
    #allocation2 [shape = 'u8[4096]{0}', space=vmem, size = 0x1000, scoped, tag = 'output window, operand 0, single buffered']
    #allocation3 [shape = 's32[1]{0}', space=sflag, size = 0x4, scoped, tag = 'scoped memory for tpu_custom_call.1']
    %13 = vsyncpa [#allocation3], 0
    // Predicated region
    $region2: #{tpu_custom_call.1} parent=1 // pred_check
      _
    $region3: #{tpu_custom_call.1} parent=1 // pred_check_branch
      %15 = sbr.rel (0) target = $region5
    $region4: #{tpu_custom_call.1} parent=1 // pred_region
      _
    $region5: #{tpu_custom_call.1} parent=1 // pred_fallthru
      _
    // Predicated region
    $region6: #{tpu_custom_call.1} parent=1 // pred_check
      _
    $region7: #{tpu_custom_call.1} parent=1 // pred_check_branch
      %17 = sbr.rel (0) target = $region9
    $region8: #{tpu_custom_call.1} parent=1 // pred_region
      _
    $region9: #{tpu_custom_call.1} parent=1 // pred_fallthru
      _
    // Predicated region
    $region10: #{tpu_custom_call.1} parent=1 // pred_check
      _
    $region11: #{tpu_custom_call.1} parent=1 // pred_check_branch
      %19 = sbr.rel (0) target = $region13
    $region12: #{tpu_custom_call.1} parent=1 // pred_region
      _
    $region13: #{tpu_custom_call.1} parent=1 // pred_fallthru
      _
    // Predicated region
    $region14: #{tpu_custom_call.1} parent=1 // pred_check
      _
    $region15: #{tpu_custom_call.1} parent=1 // pred_check_branch
      %21 = sbr.rel (0) target = $region17
    $region16: #{tpu_custom_call.1} parent=1 // pred_region
      _
    $region17: #{tpu_custom_call.1} parent=1 // pred_fallthru
      _
    // Predicated region
    $region18: #{tpu_custom_call.1} parent=1 // pred_check
      _
    $region19: #{tpu_custom_call.1} parent=1 // pred_check_branch
      %23 = sbr.rel (0) target = $region21
    $region20: #{tpu_custom_call.1} parent=1 // pred_region
      _
    $region21: #{tpu_custom_call.1} parent=1 // pred_fallthru
      _
    // Predicated region
    $region22: #{tpu_custom_call.1} parent=1 // pred_check
      _
    $region23: #{tpu_custom_call.1} parent=1 // pred_check_branch
      %25 = sbr.rel (0) target = $region25
    $region24: #{tpu_custom_call.1} parent=1 // pred_region
      _
    $region25: #{tpu_custom_call.1} parent=1 // pred_fallthru
      _
    // Predicated region
    $region26: #{tpu_custom_call.1} parent=1 // pred_check
      _
    $region27: #{tpu_custom_call.1} parent=1 // pred_check_branch
      %27 = sbr.rel (0) target = $region29
    $region28: #{tpu_custom_call.1} parent=1 // pred_region
      _
    $region29: #{tpu_custom_call.1} parent=1 // pred_fallthru
      _
    // Predicated region
    $region30: #{tpu_custom_call.1} parent=1 // pred_check
      _
    $region31: #{tpu_custom_call.1} parent=1 // pred_check_branch
      %29 = sbr.rel (0) target = $region33
    $region32: #{tpu_custom_call.1} parent=1 // pred_region
      _
    $region33: #{tpu_custom_call.1} parent=1 // pred_fallthru
      _
    %v31 = vld [vmem:[%s0] sm:$0xff]
    %v32 = vld [vmem:[%s1] sm:$0xff]
    %v33 = vld [vmem:[%s2] sm:$0xf]
    %v34 = vld [vmem:[%s2 + $0x4] sm:$0xf]
    %v35 = vld [vmem:[%s2 + $0x8] sm:$0xf]
    %v36 = vld [vmem:[%s2 + $0xc] sm:$0xf]
    %v37 = vld [vmem:[%s2 + $0x10] sm:$0xf]
    %v38 = vld [vmem:[%s2 + $0x14] sm:$0xf]
    %v39 = vld [vmem:[%s2 + $0x18] sm:$0xf]
    %v40 = vld [vmem:[%s2 + $0x1c] sm:$0xf]
    %v41 = vld [vmem:[%s2 + $0x20] sm:$0xf]
    %v42 = vld [vmem:[%s2 + $0x24] sm:$0xf]
    %v43 = vld [vmem:[%s2 + $0x28] sm:$0xf]
    %v44 = vld [vmem:[%s2 + $0x2c] sm:$0xf]
    %v45 = vld [vmem:[%s2 + $0x30] sm:$0xf]
    %v46 = vld [vmem:[%s2 + $0x34] sm:$0xf]
    %v47 = vld [vmem:[%s2 + $0x38] sm:$0xf]
    %v48 = vld [vmem:[%s2 + $0x3c] sm:$0xf]
    %v49 = vld [vmem:[%s2 + $0x40] sm:$0xf]
    %v50 = vld [vmem:[%s2 + $0x44] sm:$0xf]
    %v51 = vld [vmem:[%s2 + $0x48] sm:$0xf]
    %v52 = vld [vmem:[%s3] sm:$0x1]
    %v54 = vlaneseq
    %v55 = vshrl.u32 %v54, 7
    %v56 = vsub.s32 0, %v55
    %v57 = vrot.slane %v52, %v56
    %v60 = vunpack.c.l.b16 %v32
    %v61 = vunpack.c.h.b16 %v32
    %v62 = vpack.c.b16 %v60, %v60
    %v63 = vpack.c.b16 %v61, %v61
    %v84 = vunpack.c.l.b16 %v33
    %v85 = vunpack.c.l.b16 %v34
    %v86 = vunpack.c.l.b16 %v35
    %v87 = vunpack.c.l.b16 %v36
    %v88 = vunpack.c.l.b16 %v37
    %v89 = vunpack.c.l.b16 %v38
    %v90 = vunpack.c.l.b16 %v39
    %v91 = vunpack.c.l.b16 %v40
    %v92 = vunpack.c.l.b16 %v41
    %v93 = vunpack.c.l.b16 %v42
    %v94 = vunpack.c.l.b16 %v43
    %v95 = vunpack.c.l.b16 %v44
    %v96 = vunpack.c.l.b16 %v45
    %v97 = vunpack.c.l.b16 %v46
    %v98 = vunpack.c.l.b16 %v47
    %v99 = vunpack.c.l.b16 %v48
    %v100 = vunpack.c.l.b16 %v49
    %v101 = vunpack.c.l.b16 %v50
    %v102 = vunpack.c.l.b16 %v51
    %v103 = vpack.c.b16 %v85, %v84
    %v104 = vpack.c.b16 %v87, %v86
    %v105 = vpack.c.b16 %v89, %v88
    %v106 = vpack.c.b16 %v91, %v90
    %v107 = vpack.c.b16 %v93, %v92
    %v108 = vpack.c.b16 %v95, %v94
    %v109 = vpack.c.b16 %v97, %v96
    %v110 = vpack.c.b16 %v99, %v98
    %v111 = vpack.c.b16 %v101, %v100
    %v112 = vpack.c.b16 %v102, %v102
    %vm122 = vcmask 195584
    %v124 = vsel %vm122, %v63, 0
    %vm126 = vcmask 1043456
    %v128 = vsel %vm126, %v112, 0
    %130 = vmatprep.subr.bf16.mxu0 0
    %131 = vmatpush1.bf16.msra.mxu0 %v103
    %132 = vmatprep.subr.bf16.mxu0 0
    %133 = vmatpush1.bf16.msra.mxu0 %v104
    %134 = vmatprep.subr.bf16.mxu0 0
    %135 = vmatpush1.bf16.msra.mxu0 %v105
    %136 = vmatprep.subr.bf16.mxu0 0
    %137 = vmatpush1.bf16.msra.mxu0 %v106
    %138 = vmatprep.subr.bf16.mxu0 0
    %139 = vmatpush1.bf16.msra.mxu0 %v107
    %140 = vmatprep.subr.bf16.mxu0 0
    %141 = vmatpush1.bf16.msra.mxu0 %v108
    %142 = vmatprep.subr.bf16.mxu0 0
    %143 = vmatpush1.bf16.msra.mxu0 %v109
    %144 = vmatprep.subr.bf16.mxu0 0
    %145 = vmatpush1.bf16.msra.mxu0 %v110
    %146 = vmatprep.subr.bf16.mxu0 0
    %147 = vmatpush1.bf16.msra.mxu0 %v111
    %148 = vmatprep.subr.bf16.mxu0 0
    %149 = vmatpush1.bf16.msra.mxu0 %v128
    %150 = vmatprep.subr.bf16.mxu0 0
    %151 = vmatpush1.bf16.msra.mxu0 0
    %152 = vmatprep.subr.bf16.mxu0 0
    %153 = vmatpush1.bf16.msra.mxu0 0
    %154 = vmatprep.subr.bf16.mxu0 0
    %155 = vmatpush1.bf16.msra.mxu0 0
    %156 = vmatprep.subr.bf16.mxu0 0
    %157 = vmatpush1.bf16.msra.mxu0 0
    %158 = vmatprep.subr.bf16.mxu0 0
    %159 = vmatpush1.bf16.msra.mxu0 0
    %160 = vmatprep.subr.bf16.mxu0 0
    %161 = vmatpush1.bf16.msra.mxu0 0
    %162 = vmatprep.mubr.bf16.mxu0 %v124
    %163 = vmatmul.mubr.bf16.gmra.mrb[0].mxu0 %v62
    %v164 = vpop.f32.mrb[0].mxu0
    %v165 = vadd.f32 %v57, %v164
    %v166 = vpop.f32.mrb[0].mxu0
    %v167 = vpop.f32.mrb[0].mxu0
    %v168 = vpop.f32.mrb[0].mxu0
    %169 = vdwg.mxu0
    %v170 = vtanh.pop %v165
    %v171 = vpack.c.bf16 %v170, %v170
    %v172 = vld [vmem:[%s4] sm:$0xf]
    %v173 = vld [vmem:[%s4 + $0x4] sm:$0xf]
    %v174 = vld [vmem:[%s4 + $0x8] sm:$0xf]
    %v175 = vld [vmem:[%s4 + $0xc] sm:$0xf]
    %v176 = vld [vmem:[%s4 + $0x10] sm:$0xf]
    %v177 = vld [vmem:[%s4 + $0x14] sm:$0xf]
    %v178 = vld [vmem:[%s4 + $0x18] sm:$0xf]
    %v179 = vld [vmem:[%s4 + $0x1c] sm:$0xf]
    %v180 = vld [vmem:[%s5] sm:$0x1]
    %v182 = vlaneseq
    %v183 = vshrl.u32 %v182, 7
    %v184 = vsub.s32 0, %v183
    %v185 = vrot.slane %v180, %v184
    %v195 = vunpack.c.l.b16 %v172
    %v196 = vunpack.c.l.b16 %v173
    %v197 = vunpack.c.l.b16 %v174
    %v198 = vunpack.c.l.b16 %v175
    %v199 = vunpack.c.l.b16 %v176
    %v200 = vunpack.c.l.b16 %v177
    %v201 = vunpack.c.l.b16 %v178
    %v202 = vunpack.c.l.b16 %v179
    %v203 = vpack.c.b16 %v196, %v195
    %v204 = vpack.c.b16 %v198, %v197
    %v205 = vpack.c.b16 %v200, %v199
    %v206 = vpack.c.b16 %v202, %v201
    %vm211 = vcmask 523264
    %v213 = vsel %vm211, %v171, 0
    %215 = vmatprep.subr.bf16.mxu0 0
    %216 = vmatpush1.bf16.msra.mxu0 %v203
    %217 = vmatprep.subr.bf16.mxu0 0
    %218 = vmatpush1.bf16.msra.mxu0 %v204
    %219 = vmatprep.subr.bf16.mxu0 0
    %220 = vmatpush1.bf16.msra.mxu0 %v205
    %221 = vmatprep.subr.bf16.mxu0 0
    %222 = vmatpush1.bf16.msra.mxu0 %v206
    %223 = vmatprep.subr.bf16.mxu0 0
    %224 = vmatpush1.bf16.msra.mxu0 0
    %225 = vmatprep.subr.bf16.mxu0 0
    %226 = vmatpush1.bf16.msra.mxu0 0
    %227 = vmatprep.subr.bf16.mxu0 0
    %228 = vmatpush1.bf16.msra.mxu0 0
    %229 = vmatprep.subr.bf16.mxu0 0
    %230 = vmatpush1.bf16.msra.mxu0 0
    %231 = vmatprep.subr.bf16.mxu0 0
    %232 = vmatpush1.bf16.msra.mxu0 0
    %233 = vmatprep.subr.bf16.mxu0 0
    %234 = vmatpush1.bf16.msra.mxu0 0
    %235 = vmatprep.subr.bf16.mxu0 0
    %236 = vmatpush1.bf16.msra.mxu0 0
    %237 = vmatprep.subr.bf16.mxu0 0
    %238 = vmatpush1.bf16.msra.mxu0 0
    %239 = vmatprep.subr.bf16.mxu0 0
    %240 = vmatpush1.bf16.msra.mxu0 0
    %241 = vmatprep.subr.bf16.mxu0 0
    %242 = vmatpush1.bf16.msra.mxu0 0
    %243 = vmatprep.subr.bf16.mxu0 0
    %244 = vmatpush1.bf16.msra.mxu0 0
    %245 = vmatprep.subr.bf16.mxu0 0
    %246 = vmatpush1.bf16.msra.mxu0 0
    %247 = vmatprep.mubr.bf16.mxu0 0
    %248 = vmatmul.mubr.bf16.gmra.mrb[0].mxu0 %v213
    %v249 = vpop.f32.mrb[0].mxu0
    %v250 = vadd.f32 %v185, %v249
    %v251 = vpop.f32.mrb[0].mxu0
    %v252 = vpop.f32.mrb[0].mxu0
    %v253 = vpop.f32.mrb[0].mxu0
    %254 = vdwg.mxu0
    %v255 = vtanh.pop %v250
    %v256 = vpack.c.bf16 %v255, %v255
    %v257 = vld [vmem:[%s6] sm:$0xf]
    %v258 = vld [vmem:[%s6 + $0x4] sm:$0xf]
    %v259 = vld [vmem:[%s6 + $0x8] sm:$0xf]
    %v260 = vld [vmem:[%s6 + $0xc] sm:$0xf]
    %v261 = vld [vmem:[%s6 + $0x10] sm:$0xf]
    %v262 = vld [vmem:[%s6 + $0x14] sm:$0xf]
    %v263 = vld [vmem:[%s6 + $0x18] sm:$0xf]
    %v264 = vld [vmem:[%s6 + $0x1c] sm:$0xf]
    %v265 = vld [vmem:[%s7] sm:$0x1]
    %v267 = vlaneseq
    %v268 = vshrl.u32 %v267, 7
    %v269 = vsub.s32 0, %v268
    %v270 = vrot.slane %v265, %v269
    %v280 = vunpack.c.l.b16 %v257
    %v281 = vunpack.c.l.b16 %v258
    %v282 = vunpack.c.l.b16 %v259
    %v283 = vunpack.c.l.b16 %v260
    %v284 = vunpack.c.l.b16 %v261
    %v285 = vunpack.c.l.b16 %v262
    %v286 = vunpack.c.l.b16 %v263
    %v287 = vunpack.c.l.b16 %v264
    %v288 = vpack.c.b16 %v281, %v280
    %v289 = vpack.c.b16 %v283, %v282
    %v290 = vpack.c.b16 %v285, %v284
    %v291 = vpack.c.b16 %v287, %v286
    %v297 = vsel %vm211, %v256, 0
    %299 = vmatprep.subr.bf16.mxu0 0
    %300 = vmatpush1.bf16.msra.mxu0 %v288
    %301 = vmatprep.subr.bf16.mxu0 0
    %302 = vmatpush1.bf16.msra.mxu0 %v289
    %303 = vmatprep.subr.bf16.mxu0 0
    %304 = vmatpush1.bf16.msra.mxu0 %v290
    %305 = vmatprep.subr.bf16.mxu0 0
    %306 = vmatpush1.bf16.msra.mxu0 %v291
    %307 = vmatprep.subr.bf16.mxu0 0
    %308 = vmatpush1.bf16.msra.mxu0 0
    %309 = vmatprep.subr.bf16.mxu0 0
    %310 = vmatpush1.bf16.msra.mxu0 0
    %311 = vmatprep.subr.bf16.mxu0 0
    %312 = vmatpush1.bf16.msra.mxu0 0
    %313 = vmatprep.subr.bf16.mxu0 0
    %314 = vmatpush1.bf16.msra.mxu0 0
    %315 = vmatprep.subr.bf16.mxu0 0
    %316 = vmatpush1.bf16.msra.mxu0 0
    %317 = vmatprep.subr.bf16.mxu0 0
    %318 = vmatpush1.bf16.msra.mxu0 0
    %319 = vmatprep.subr.bf16.mxu0 0
    %320 = vmatpush1.bf16.msra.mxu0 0
    %321 = vmatprep.subr.bf16.mxu0 0
    %322 = vmatpush1.bf16.msra.mxu0 0
    %323 = vmatprep.subr.bf16.mxu0 0
    %324 = vmatpush1.bf16.msra.mxu0 0
    %325 = vmatprep.subr.bf16.mxu0 0
    %326 = vmatpush1.bf16.msra.mxu0 0
    %327 = vmatprep.subr.bf16.mxu0 0
    %328 = vmatpush1.bf16.msra.mxu0 0
    %329 = vmatprep.subr.bf16.mxu0 0
    %330 = vmatpush1.bf16.msra.mxu0 0
    %331 = vmatprep.mubr.bf16.mxu0 0
    %332 = vmatmul.mubr.bf16.gmra.mrb[0].mxu0 %v297
    %v333 = vpop.f32.mrb[0].mxu0
    %v334 = vadd.f32 %v270, %v333
    %v335 = vpop.f32.mrb[0].mxu0
    %v336 = vpop.f32.mrb[0].mxu0
    %v337 = vpop.f32.mrb[0].mxu0
    %338 = vdwg.mxu0
    %vm339 = vcmask 31744
    %v340 = vsel %vm339, %v334, -inf
    %341 = vmax.xlane.f32.xlu0 %v340
    %v342 = vpop.xlane.xlu0 %341
    %v343 = vsub.f32 %v334, %v342
    %v344 = vmul.f32 %v343, 1.442695
    %v345 = vpow.pop %v344
    %v346 = vsel %vm339, %v345, 0.0
    %347 = vadd.xlane.f32.xlu0 %v346
    %v348 = vpop.xlane.xlu0 %347
    %v349 = vrcp.pop %v348
    %v350 = vmul.f32 1.0, %v349
    %v351 = vlog2.pop %v348
    %v352 = vmul.f32 %v351, 0.6931472
    %v353 = vadd.f32 %v352, %v342
    %v354 = vsub.f32 %v334, %v353
    %v355 = vmul.f32 %v345, %v350
    %v356 = vmul.f32 %v355, %v354
    %v357 = vsel %vm339, %v356, 0.0
    %358 = vadd.xlane.f32.xlu0 %v357
    %v359 = vpop.xlane.xlu0 %358
    %v360 = vsub.f32 0.0, %v359
    %v361 = vlaneseq
    %v362 = vand.u32 %v361, 127
    %363 = vset.pattern.permute.xlu0 1
    %364 = vperm.xlu0 %363, %v31
    %v365 = vpop.permute.xlu0 %364
    %vm366 = vcmp.eq.s32.totalorder %v362, %v365
    %v367 = vsel %vm366, %v354, 0.0
    %v368 = vsel %vm339, %v367, 0.0
    %369 = vadd.xlane.f32.xlu0 %v368
    %v370 = vpop.xlane.xlu0 %369
    %v371 = vadd.f32 %v370, 0.0
    %v372 = vadd.f32 %v360, 0.0
    %vm373 = vcmask 64544
    %v374 = vsel %vm373, %v334, -inf
    %375 = vmax.xlane.f32.xlu0 %v374
    %v376 = vpop.xlane.xlu0 %375
    %v377 = vsub.f32 %v334, %v376
    %v378 = vmul.f32 %v377, 1.442695
    %v379 = vpow.pop %v378
    %381 = vrot.lane.b32.xlu0 %v379, 124
    %v382 = vpop.permute.xlu0 %381
    %v384 = vsel %vm339, %v382, 0.0
    %385 = vadd.xlane.f32.xlu0 %v384
    %v386 = vpop.xlane.xlu0 %385
    %v387 = vrcp.pop %v386
    %v388 = vmul.f32 1.0, %v387
    %v389 = vlog2.pop %v386
    %v390 = vmul.f32 %v389, 0.6931472
    %v391 = vadd.f32 %v390, %v376
    %v392 = vsub.f32 %v334, %v391
    %v393 = vmul.f32 %v379, %v388
    %v394 = vmul.f32 %v393, %v392
    %396 = vrot.lane.b32.xlu0 %v394, 124
    %v397 = vpop.permute.xlu0 %396
    %v399 = vsel %vm339, %v397, 0.0
    %400 = vadd.xlane.f32.xlu0 %v399
    %v401 = vpop.xlane.xlu0 %400
    %v402 = vsub.f32 0.0, %v401
    %403 = vset.pattern.permute.xlu0 2
    %404 = vperm.xlu0 %403, %v31
    %v405 = vpop.permute.xlu0 %404
    %vm406 = vcmp.eq.s32.totalorder %v362, %v405
    %408 = vrot.lane.b32.xlu0 %v392, 124
    %v409 = vpop.permute.xlu0 %408
    %v411 = vsel %vm406, %v409, 0.0
    %v412 = vsel %vm339, %v411, 0.0
    %413 = vadd.xlane.f32.xlu0 %v412
    %v414 = vpop.xlane.xlu0 %413
    %v415 = vadd.f32 %v371, %v414
    %v416 = vadd.f32 %v372, %v402
    %vm417 = vcmask 97344
    %v418 = vsel %vm417, %v334, -inf
    %419 = vmax.xlane.f32.xlu0 %v418
    %v420 = vpop.xlane.xlu0 %419
    %v421 = vsub.f32 %v334, %v420
    %v422 = vmul.f32 %v421, 1.442695
    %v423 = vpow.pop %v422
    %425 = vrot.lane.b32.xlu0 %v423, 120
    %v426 = vpop.permute.xlu0 %425
    %v428 = vsel %vm339, %v426, 0.0
    %429 = vadd.xlane.f32.xlu0 %v428
    %v430 = vpop.xlane.xlu0 %429
    %v431 = vrcp.pop %v430
    %v432 = vmul.f32 1.0, %v431
    %v433 = vlog2.pop %v430
    %v434 = vmul.f32 %v433, 0.6931472
    %v435 = vadd.f32 %v434, %v420
    %v436 = vsub.f32 %v334, %v435
    %v437 = vmul.f32 %v423, %v432
    %v438 = vmul.f32 %v437, %v436
    %440 = vrot.lane.b32.xlu0 %v438, 120
    %v441 = vpop.permute.xlu0 %440
    %v443 = vsel %vm339, %v441, 0.0
    %444 = vadd.xlane.f32.xlu0 %v443
    %v445 = vpop.xlane.xlu0 %444
    %v446 = vsub.f32 0.0, %v445
    %447 = vset.pattern.permute.xlu0 3
    %448 = vperm.xlu0 %447, %v31
    %v449 = vpop.permute.xlu0 %448
    %vm450 = vcmp.eq.s32.totalorder %v362, %v449
    %452 = vrot.lane.b32.xlu0 %v436, 120
    %v453 = vpop.permute.xlu0 %452
    %v455 = vsel %vm450, %v453, 0.0
    %v456 = vsel %vm339, %v455, 0.0
    %457 = vadd.xlane.f32.xlu0 %v456
    %v458 = vpop.xlane.xlu0 %457
    %v459 = vadd.f32 %v415, %v458
    %v460 = vadd.f32 %v416, %v446
    %vm461 = vcmp.eq.s32.totalorder %v362, 0
    %v462 = vsel %vm461, %v459, 0.0
    %vm463 = vcmp.eq.s32.totalorder %v362, 1
    %465 = vset.pattern.permute.xlu0 12
    %466 = vperm.xlu0 %465, %v334
    %v467 = vpop.permute.xlu0 %466
    %v469 = vsel %vm463, %v467, 0.0
    %v470 = vadd.f32 %v462, %v469
    %vm471 = vcmp.eq.s32.totalorder %v362, 2
    %v472 = vsel %vm471, %v460, 0.0
    %v473 = vadd.f32 %v470, %v472
    %vm474 = vcmask 64512
    %475 = vst.msk [vmem:[#allocation2] sm:$0xff] %vm474, %v473
    // Predicated region
    $region34: #{tpu_custom_call.1} parent=1 // pred_check
      _
    $region35: #{tpu_custom_call.1} parent=1 // pred_check_branch
      %477 = sbr.rel (0) target = $region37
    $region36: #{tpu_custom_call.1} parent=1 // pred_region
      %s479 = ssub.s32 128, 128
      %480 = vsyncadd [#allocation3], %s479
      %s482 = sshll.u32 [#allocation2], 4
      %s483 = int_to_ptr.vmem [resolvable:$true] %s482
      %485 = dma.vmem_to_hbm [thread:$0]  %s483, 128, %s8, [#allocation3]
    $region37: #{tpu_custom_call.1} parent=1 // pred_fallthru
      _
    // Predicated region
    $region38: #{tpu_custom_call.1} parent=1 // pred_check
      _
    $region39: #{tpu_custom_call.1} parent=1 // pred_check_branch
      %487 = sbr.rel (0) target = $region41
    $region40: #{tpu_custom_call.1} parent=1 // pred_region
      %488 = dma.done [#allocation3], 128
    $region41: #{tpu_custom_call.1} parent=1 // pred_fallthru
      _
    %489 = vsyncpa [#allocation3], 1

</llo_original>
